<compile_context>
chip_gen: v5e
topology: v5e:2x2
jax: 0.10.0
libtpu: 0.0.40
codegen_flags: <defaults>
</compile_context>

<pallas_src>
import functools

import jax
import jax.numpy as jnp
from jax.experimental import pallas as pl
from jax.experimental.pallas import tpu as pltpu

LANE = 128      # lane width (last-dim granularity)
SUBLANE = 8     # sublane width (second-to-last-dim granularity)


def _round_up(x, m):
    return ((x + m - 1) // m) * m


# --------------------------------------------------------------------------
# Kernel
# --------------------------------------------------------------------------
def ircl_kernel(img_ref, inv_ref,
                w1_ref, b1_ref,
                w2s_ref, w2i_ref, b2_ref,
                w3_ref, b3_ref,
                out_ref):
    cdt = w1_ref.dtype   # compute dtype (f32 or bf16); biases are always f32

    # specific: Linear + ReLU. Activations are cast in-kernel (no wrapper
    # pass); MXU accumulates in f32, elementwise math stays f32.
    d = jnp.dot(img_ref[...].astype(cdt), w1_ref[...],
                preferred_element_type=jnp.float32)
    d = jnp.maximum(d + b1_ref[...], 0.0)

    # classifier_layer over cat([d, invariant], 1), expressed as two matmuls
    # summed (no concat temp; invariant stream stays unpadded at K=inv_dim).
    h = (jnp.dot(d.astype(cdt), w2s_ref[...],
                 preferred_element_type=jnp.float32)
         + jnp.dot(inv_ref[...].astype(cdt), w2i_ref[...],
                   preferred_element_type=jnp.float32))
    h = jnp.maximum(h + b2_ref[...], 0.0)

    # output: Linear (lane-dense 128-wide padded store).
    logits = jnp.dot(h.astype(cdt), w3_ref[...],
                     preferred_element_type=jnp.float32)
    out_ref[...] = (logits + b3_ref[...]).astype(out_ref.dtype)


# --------------------------------------------------------------------------
# Wrapper
# --------------------------------------------------------------------------
@functools.partial(jax.jit, static_argnames=("n_classes", "tile_b"))
def ircl_forward(img, invariant, padded_params, *, n_classes, tile_b=1024):
    w1p, b1p, w2sp, w2ip, b2p, w3p, b3p = padded_params

    B, img_dim = img.shape
    inv_dim = invariant.shape[1]
    NP = w3p.shape[1]                       # padded n_classes
    out_dtype = w1p.dtype                   # f32 or bf16 output slab

    # Batch tiling: TB a multiple of 8; no batch padding — Pallas handles a
    # partial last block (harmless: rows are independent, no in-kernel
    # reduction over the batch tile).
    TB = min(tile_b, _round_up(B, SUBLANE))
    grid = (pl.cdiv(B, TB),)

    def act_spec(ncols):
        return pl.BlockSpec((TB, ncols), lambda i: (i, 0))

    def resident_spec(arr):
        # Whole array, same block every grid step -> stays VMEM-resident.
        return pl.BlockSpec(arr.shape, lambda i: (0, 0))

    out = pl.pallas_call(
        ircl_kernel,
        out_shape=jax.ShapeDtypeStruct((B, NP), out_dtype),
        grid=grid,
        in_specs=[
            act_spec(img_dim),               # img tile (unpadded, f32)
            act_spec(inv_dim),               # invariant tile (unpadded, f32)
            resident_spec(w1p), resident_spec(b1p),
            resident_spec(w2sp), resident_spec(w2ip), resident_spec(b2p),
            resident_spec(w3p), resident_spec(b3p),
        ],
        out_specs=pl.BlockSpec((TB, NP), lambda i: (i, 0)),
        compiler_params=pltpu.CompilerParams(
            dimension_semantics=("parallel",)),
    )(img, invariant, w1p, b1p, w2sp, w2ip, b2p, w3p, b3p)

    # Tiny slice + cast on (B, n_classes) only.
    return out[:, :n_classes].astype(jnp.float32)


# --------------------------------------------------------------------------
# Parameter construction
# --------------------------------------------------------------------------
def init_params(key, img_dim, invariant_n_hidden, specific_n_hidden,
                classification_n_hidden, n_classes):
    """Deterministic synthetic parameters (PyTorch-like uniform fan-in init),
    stored as (in_features, out_features) so the kernel computes x @ W."""
    ks = jax.random.split(key, 6)

    def lin(kw, kb, fan_in, fan_out):
        bound = 1.0 / jnp.sqrt(fan_in)
        w = jax.random.uniform(kw, (fan_in, fan_out), jnp.float32, -bound, bound)
        b = jax.random.uniform(kb, (1, fan_out), jnp.float32, -bound, bound)
        return w, b

    w1, b1 = lin(ks[0], ks[1], img_dim, specific_n_hidden)
    w2, b2 = lin(ks[2], ks[3], specific_n_hidden + invariant_n_hidden,
                 classification_n_hidden)
    w3, b3 = lin(ks[4], ks[5], classification_n_hidden, n_classes)
    return (w1, b1, w2, b2, w3, b3)


def pad_params(params, *, compute_dtype=jnp.float32):
    """Pad every *output* feature dim to a multiple of 128 (lane-dense loads
    and stores), split W2 into its specific/invariant row blocks, and cast the
    weights to the compute dtype once.  Biases stay f32 (elementwise math is
    kept in f32 inside the kernel).  Input K dims (img_dim, invariant) are NOT
    padded — the activations are streamed unpadded from HBM."""
    (w1, b1, w2, b2, w3, b3) = params
    img_dim, spec = w1.shape
    clz = w2.shape[1]
    inv = w2.shape[0] - spec
    ncls = w3.shape[1]

    SP = _round_up(spec, LANE)
    CP = _round_up(clz, LANE)
    NP = _round_up(ncls, LANE)

    w1p = jnp.zeros((img_dim, SP), jnp.float32).at[:, :spec].set(w1)
    b1p = jnp.zeros((1, SP), jnp.float32).at[:, :spec].set(b1)

    # W2 split: padded d columns are exactly 0 (ReLU(0+0)) and the padded
    # rows of w2sp are 0, so d_padded @ w2sp == d @ W2[:spec] exactly.
    w2sp = jnp.zeros((SP, CP), jnp.float32).at[:spec, :clz].set(w2[:spec])
    w2ip = jnp.zeros((inv, CP), jnp.float32).at[:, :clz].set(w2[spec:])
    b2p = jnp.zeros((1, CP), jnp.float32).at[:, :clz].set(b2)

    w3p = jnp.zeros((CP, NP), jnp.float32).at[:clz, :ncls].set(w3)
    b3p = jnp.zeros((1, NP), jnp.float32).at[:, :ncls].set(b3)

    return (w1p.astype(compute_dtype), b1p,
            w2sp.astype(compute_dtype), w2ip.astype(compute_dtype), b2p,
            w3p.astype(compute_dtype), b3p)


def reference_forward(img, invariant, params):
    """Plain-JAX f32 reference matching the PyTorch forward."""
    (w1, b1, w2, b2, w3, b3) = params
    d = jnp.maximum(img @ w1 + b1, 0.0)
    x = jnp.concatenate([d, invariant], axis=1)
    h = jnp.maximum(x @ w2 + b2, 0.0)
    return h @ w3 + b3


# --------------------------------------------------------------------------
# Demo / self-test
# --------------------------------------------------------------------------
if __name__ == "__main__":
    # Small shapes consistent with the module: img_shape = (1, 16, 16) -> 256.
    B = 32
    img_dim = 1 * 16 * 16
    invariant_n_hidden = 32
    specific_n_hidden = 64
    classification_n_hidden = 32
    n_classes = 10

    key = jax.random.PRNGKey(0)
    k_img, k_inv, k_par = jax.random.split(key, 3)

    img = jax.random.normal(k_img, (B, img_dim), jnp.float32)
    invariant = jax.random.normal(k_inv, (B, invariant_n_hidden), jnp.float32)

    params = init_params(k_par, img_dim, invariant_n_hidden,
                         specific_n_hidden, classification_n_hidden, n_classes)
    ref = reference_forward(img, invariant, params)

    # f32 path (v5e-friendly default), tile_b=16 so the batch grid has >1
    # step (exercises pipelining + partial-tile-free multi-step path).
    padded_f32 = pad_params(params, compute_dtype=jnp.float32)
    logits_f32 = ircl_forward(img, invariant, padded_f32,
                              n_classes=n_classes, tile_b=16)
    logits_f32 = jax.block_until_ready(logits_f32)
    assert logits_f32.shape == (B, n_classes)
    assert jnp.allclose(logits_f32, ref, atol=1e-4, rtol=1e-4), "f32 mismatch"

    # Single-step grid (default tile) sanity check.
    logits_f32_big = jax.block_until_ready(
        ircl_forward(img, invariant, padded_f32, n_classes=n_classes))
    assert jnp.allclose(logits_f32_big, ref, atol=1e-4, rtol=1e-4), "f32/big mismatch"

    # bf16 operand + bf16 output path (v6e/v7x MXU fast path; f32 MXU
    # accumulation + f32 bias/ReLU inside the kernel).
    padded_bf16 = pad_params(params, compute_dtype=jnp.bfloat16)
    logits_bf16 = ircl_forward(img, invariant, padded_bf16,
                               n_classes=n_classes, tile_b=16)
    logits_bf16 = jax.block_until_ready(logits_bf16)
    assert jnp.allclose(logits_bf16, ref, atol=5e-2, rtol=5e-2), "bf16 mismatch"

    print("KERNEL_OK")
</pallas_src>

<mosaic_0001>
module attributes {stable_mosaic.version = 11 : i64} {
  func.func @ircl_kernel(%arg0: i32, %arg1: memref<16x256xf32, #tpu.memory_space<vmem>>, %arg2: memref<16x32xf32, #tpu.memory_space<vmem>>, %arg3: memref<256x128xf32, #tpu.memory_space<vmem>>, %arg4: memref<1x128xf32, #tpu.memory_space<vmem>>, %arg5: memref<128x128xf32, #tpu.memory_space<vmem>>, %arg6: memref<32x128xf32, #tpu.memory_space<vmem>>, %arg7: memref<1x128xf32, #tpu.memory_space<vmem>>, %arg8: memref<128x128xf32, #tpu.memory_space<vmem>>, %arg9: memref<1x128xf32, #tpu.memory_space<vmem>>, %arg10: memref<16x128xf32, #tpu.memory_space<vmem>>) attributes {dimension_semantics = [#tpu.dimension_semantics<parallel>], iteration_bounds = array<i64: 2>, scalar_prefetch = 0 : i64, scratch_operands = 0 : i64, tpu.core_type = #tpu.core_type<tc>, window_params = [{transform_indices = @transform_0, window_bounds = array<i64: 16, 256>}, {transform_indices = @transform_1, window_bounds = array<i64: 16, 32>}, {pipeline_mode = #tpu.pipeline_mode<synchronous>, transform_indices = @transform_2, window_bounds = array<i64: 256, 128>}, {pipeline_mode = #tpu.pipeline_mode<synchronous>, transform_indices = @transform_3, window_bounds = array<i64: 1, 128>}, {pipeline_mode = #tpu.pipeline_mode<synchronous>, transform_indices = @transform_4, window_bounds = array<i64: 128, 128>}, {pipeline_mode = #tpu.pipeline_mode<synchronous>, transform_indices = @transform_5, window_bounds = array<i64: 32, 128>}, {pipeline_mode = #tpu.pipeline_mode<synchronous>, transform_indices = @transform_6, window_bounds = array<i64: 1, 128>}, {pipeline_mode = #tpu.pipeline_mode<synchronous>, transform_indices = @transform_7, window_bounds = array<i64: 128, 128>}, {pipeline_mode = #tpu.pipeline_mode<synchronous>, transform_indices = @transform_8, window_bounds = array<i64: 1, 128>}, {transform_indices = @transform_9, window_bounds = array<i64: 16, 128>}]} {
    %c0 = arith.constant 0 : index
    %c0_0 = arith.constant 0 : index
    %0 = vector.load %arg1[%c0, %c0_0] : memref<16x256xf32, #tpu.memory_space<vmem>>, vector<16x256xf32>
    %c0_1 = arith.constant 0 : index
    %c0_2 = arith.constant 0 : index
    %1 = vector.load %arg3[%c0_1, %c0_2] : memref<256x128xf32, #tpu.memory_space<vmem>>, vector<256x128xf32>
    %cst = arith.constant dense<0.000000e+00> : vector<16x128xf32>
    %2 = tpu.matmul %0, %1, %cst {dimension_numbers = #tpu.dot_dimension_numbers<[1], [0], [0], [1], [0, 0, 1, 1], [], []>} : vector<16x256xf32>, vector<256x128xf32>, vector<16x128xf32> -> vector<16x128xf32>
    %c0_3 = arith.constant 0 : index
    %c0_4 = arith.constant 0 : index
    %3 = vector.load %arg4[%c0_3, %c0_4] : memref<1x128xf32, #tpu.memory_space<vmem>>, vector<1x128xf32>
    %4 = vector.broadcast %3 : vector<1x128xf32> to vector<16x128xf32>
    %5 = arith.addf %2, %4 : vector<16x128xf32>
    %cst_5 = arith.constant 0.000000e+00 : f32
    %6 = vector.broadcast %cst_5 : f32 to vector<16x128xf32>
    %7 = arith.maximumf %5, %6 : vector<16x128xf32>
    %c0_6 = arith.constant 0 : index
    %c0_7 = arith.constant 0 : index
    %8 = vector.load %arg5[%c0_6, %c0_7] : memref<128x128xf32, #tpu.memory_space<vmem>>, vector<128x128xf32>
    %cst_8 = arith.constant dense<0.000000e+00> : vector<16x128xf32>
    %9 = tpu.matmul %7, %8, %cst_8 {dimension_numbers = #tpu.dot_dimension_numbers<[1], [0], [0], [1], [0, 0, 1, 1], [], []>} : vector<16x128xf32>, vector<128x128xf32>, vector<16x128xf32> -> vector<16x128xf32>
    %c0_9 = arith.constant 0 : index
    %c0_10 = arith.constant 0 : index
    %10 = vector.load %arg2[%c0_9, %c0_10] : memref<16x32xf32, #tpu.memory_space<vmem>>, vector<16x32xf32>
    %c0_11 = arith.constant 0 : index
    %c0_12 = arith.constant 0 : index
    %11 = vector.load %arg6[%c0_11, %c0_12] : memref<32x128xf32, #tpu.memory_space<vmem>>, vector<32x128xf32>
    %cst_13 = arith.constant dense<0.000000e+00> : vector<16x128xf32>
    %12 = tpu.matmul %10, %11, %cst_13 {dimension_numbers = #tpu.dot_dimension_numbers<[1], [0], [0], [1], [0, 0, 1, 1], [], []>} : vector<16x32xf32>, vector<32x128xf32>, vector<16x128xf32> -> vector<16x128xf32>
    %13 = arith.addf %9, %12 : vector<16x128xf32>
    %c0_14 = arith.constant 0 : index
    %c0_15 = arith.constant 0 : index
    %14 = vector.load %arg7[%c0_14, %c0_15] : memref<1x128xf32, #tpu.memory_space<vmem>>, vector<1x128xf32>
    %15 = vector.broadcast %14 : vector<1x128xf32> to vector<16x128xf32>
    %16 = arith.addf %13, %15 : vector<16x128xf32>
    %cst_16 = arith.constant 0.000000e+00 : f32
    %17 = vector.broadcast %cst_16 : f32 to vector<16x128xf32>
    %18 = arith.maximumf %16, %17 : vector<16x128xf32>
    %c0_17 = arith.constant 0 : index
    %c0_18 = arith.constant 0 : index
    %19 = vector.load %arg8[%c0_17, %c0_18] : memref<128x128xf32, #tpu.memory_space<vmem>>, vector<128x128xf32>
    %cst_19 = arith.constant dense<0.000000e+00> : vector<16x128xf32>
    %20 = tpu.matmul %18, %19, %cst_19 {dimension_numbers = #tpu.dot_dimension_numbers<[1], [0], [0], [1], [0, 0, 1, 1], [], []>} : vector<16x128xf32>, vector<128x128xf32>, vector<16x128xf32> -> vector<16x128xf32>
    %c0_20 = arith.constant 0 : index
    %c0_21 = arith.constant 0 : index
    %21 = vector.load %arg9[%c0_20, %c0_21] : memref<1x128xf32, #tpu.memory_space<vmem>>, vector<1x128xf32>
    %22 = vector.broadcast %21 : vector<1x128xf32> to vector<16x128xf32>
    %23 = arith.addf %20, %22 : vector<16x128xf32>
    %c0_22 = arith.constant 0 : index
    %c0_23 = arith.constant 0 : index
    %24 = vector.load %arg10[%c0_22, %c0_23] : memref<16x128xf32, #tpu.memory_space<vmem>>, vector<16x128xf32>
    tpu.vector_store %arg10[%c0_22, %c0_23], %23 {strides = array<i32>} : memref<16x128xf32, #tpu.memory_space<vmem>>, vector<16x128xf32>,
    return
  }
  func.func @transform_0(%arg0: i32) -> (i32, i32) {
    %c0_i32 = arith.constant 0 : i32
    %c0_i32_0 = arith.constant 0 : i32
    return %arg0, %c0_i32 : i32, i32
  }
  func.func @transform_1(%arg0: i32) -> (i32, i32) {
    %c0_i32 = arith.constant 0 : i32
    %c0_i32_0 = arith.constant 0 : i32
    return %arg0, %c0_i32 : i32, i32
  }
  func.func @transform_2(%arg0: i32) -> (i32, i32) {
    %c0_i32 = arith.constant 0 : i32
    %c0_i32_0 = arith.constant 0 : i32
    %c0_i32_1 = arith.constant 0 : i32
    return %c0_i32, %c0_i32_0 : i32, i32
  }
  func.func @transform_3(%arg0: i32) -> (i32, i32) {
    %c0_i32 = arith.constant 0 : i32
    %c0_i32_0 = arith.constant 0 : i32
    %c0_i32_1 = arith.constant 0 : i32
    return %c0_i32, %c0_i32_0 : i32, i32
  }
  func.func @transform_4(%arg0: i32) -> (i32, i32) {
    %c0_i32 = arith.constant 0 : i32
    %c0_i32_0 = arith.constant 0 : i32
    %c0_i32_1 = arith.constant 0 : i32
    return %c0_i32, %c0_i32_0 : i32, i32
  }
  func.func @transform_5(%arg0: i32) -> (i32, i32) {
    %c0_i32 = arith.constant 0 : i32
    %c0_i32_0 = arith.constant 0 : i32
    %c0_i32_1 = arith.constant 0 : i32
    return %c0_i32, %c0_i32_0 : i32, i32
  }
  func.func @transform_6(%arg0: i32) -> (i32, i32) {
    %c0_i32 = arith.constant 0 : i32
    %c0_i32_0 = arith.constant 0 : i32
    %c0_i32_1 = arith.constant 0 : i32
    return %c0_i32, %c0_i32_0 : i32, i32
  }
  func.func @transform_7(%arg0: i32) -> (i32, i32) {
    %c0_i32 = arith.constant 0 : i32
    %c0_i32_0 = arith.constant 0 : i32
    %c0_i32_1 = arith.constant 0 : i32
    return %c0_i32, %c0_i32_0 : i32, i32
  }
  func.func @transform_8(%arg0: i32) -> (i32, i32) {
    %c0_i32 = arith.constant 0 : i32
    %c0_i32_0 = arith.constant 0 : i32
    %c0_i32_1 = arith.constant 0 : i32
    return %c0_i32, %c0_i32_0 : i32, i32
  }
  func.func @transform_9(%arg0: i32) -> (i32, i32) {
    %c0_i32 = arith.constant 0 : i32
    %c0_i32_0 = arith.constant 0 : i32
    return %arg0, %c0_i32 : i32, i32
  }
}

</mosaic_0001>

<llo_original>
// kernel: ircl_forward.1
$region0: #{ircl_forward.1}
  #allocation0 [shape = 'u32[]', space=smem, size = 0x4, offset = 0x4, fixed_abs, tag = 'smem constant byte address 0x4 - core index']
  #allocation1 [shape = 'u32[72,128]{1,0:T(1,128)}', space=vmem, size = 0x9000, scoped, tag = 'internal scratch']
  %s0 = inlined_call_operand.hbm [shape: f32[32,256], index: 0, kind: input, shape index: {}]
  %s1 = inlined_call_operand.hbm [shape: f32[32,32], index: 1, kind: input, shape index: {}]
  %s2 = inlined_call_operand.hbm [shape: f32[256,128], index: 2, kind: input, shape index: {}]
  %s3 = inlined_call_operand.vmem [shape: f32[1,128], index: 3, kind: input, shape index: {}]
  %s4 = inlined_call_operand.hbm [shape: f32[128,128], index: 4, kind: input, shape index: {}]
  %s5 = inlined_call_operand.hbm [shape: f32[32,128], index: 5, kind: input, shape index: {}]
  %s6 = inlined_call_operand.vmem [shape: f32[1,128], index: 6, kind: input, shape index: {}]
  %s7 = inlined_call_operand.hbm [shape: f32[128,128], index: 7, kind: input, shape index: {}]
  %s8 = inlined_call_operand.vmem [shape: f32[1,128], index: 8, kind: input, shape index: {}]
  %s9 = inlined_call_operand.vmem [shape: f32[32,128], index: 9, kind: output, shape index: {}]
  %s10 = sld [smem:[#allocation0]]
  $region93: #{ircl_forward.1} parent=0
    _
  %s12 = ssub.s32 1, %s10
  %s13 = scalar_select 0, %s12, %s10
  $region1: #{ircl_forward.1} parent=0
    #allocation2 [shape = 'u8[32768]{0}', space=vmem, size = 0x8000, scoped, tag = 'input window, operand 0']
    #allocation3 [shape = 's32[2]{0}', space=sflag, size = 0x8, scoped, tag = 'scoped memory for ircl_forward.1']
    #allocation4 [shape = 'u8[16384]{0}', space=vmem, size = 0x4000, scoped, tag = 'input window, operand 1']
    #allocation5 [shape = 's32[2]{0}', space=sflag, size = 0x8, scoped, tag = 'scoped memory for ircl_forward.1']
    #allocation6 [shape = 'u8[131072]{0}', space=vmem, size = 0x20000, scoped, tag = 'input window, operand 2, single buffered']
    #allocation7 [shape = 'u8[65536]{0}', space=vmem, size = 0x10000, scoped, tag = 'input window, operand 4, single buffered']
    #allocation8 [shape = 's32[1]{0}', space=sflag, size = 0x4, scoped, tag = 'scoped memory for ircl_forward.1']
    #allocation9 [shape = 'u8[16384]{0}', space=vmem, size = 0x4000, scoped, tag = 'input window, operand 5, single buffered']
    #allocation10 [shape = 'u8[65536]{0}', space=vmem, size = 0x10000, scoped, tag = 'input window, operand 7, single buffered']
    #allocation11 [shape = 's32[1]{0}', space=sflag, size = 0x4, scoped, tag = 'scoped memory for ircl_forward.1']
    %14 = vsyncpa [#allocation3], 0
    %s15 = scalar_lea.sflag [#allocation3], 1
    %16 = vsyncpa %s15, 0
    %17 = vsyncpa [#allocation5], 0
    %s18 = scalar_lea.sflag [#allocation5], 1
    %19 = vsyncpa %s18, 0
    %20 = vsyncpa [#allocation8], 0
    %21 = vsyncpa [#allocation11], 0
    loop: start=0, step=1, limit=4
    $region2: #{ircl_forward.1} parent=1 // loop_pre_header
      _
    $region3: #{ircl_forward.1} parent=1 // loop_header
      %s23 = sphi 0, %s27
      %p24 = scmp.ge.s32.totalorder %s23, 4
      %s33 = sphi 0, %s35
      %s36 = sphi 0, %s33
      %s37 = sphi 0, %s36
      %s53 = sphi 0, %s37
      %s59 = sphi 0, %s61
      %s62 = sphi 0, %s59
      %s63 = sphi 0, %s62
      %s79 = sphi 0, %s63
      %s83 = sphi 0, %s83
      %s85 = sphi 0, %s83
      %s86 = sphi 0, %s85
      %s100 = sphi 0, %s86
      %s104 = sphi 0, %s104
      %s106 = sphi 0, %s104
      %s107 = sphi 0, %s106
      %s121 = sphi 0, %s107
      %s125 = sphi 0, %s125
      %s127 = sphi 0, %s125
      %s128 = sphi 0, %s127
      %s142 = sphi 0, %s128
      %s146 = sphi 0, %s146
      %s148 = sphi 0, %s146
      %s149 = sphi 0, %s148
      %s163 = sphi 0, %s149
      %s167 = sphi 0, %s167
      %s169 = sphi 0, %s167
      %s170 = sphi 0, %s169
      %s184 = sphi 0, %s170
      %s188 = sphi 0, %s188
      %s190 = sphi 0, %s188
      %s191 = sphi 0, %s190
      %s205 = sphi 0, %s191
      %s209 = sphi 0, %s209
      %s211 = sphi 0, %s209
      %s212 = sphi 0, %s211
      %s226 = sphi 0, %s212
      %s232 = sphi 0, %s234
      %s235 = sphi 0, %s232
      %s236 = sphi 0, %s235
      %s252 = sphi 0, %s236
    $region4: #{ircl_forward.1} parent=1 // loop_header_branch
      %26 = sbr.rel (%p24) target = $region8
    $region5: #{ircl_forward.1} parent=1 // loop_body
      %s28 = ssub.s32 %s23, 1
      %s29 = ssub.s32 %s23, 2
      %s30 = sadd.s32 %s23, 1
      %s31 = ssub.s32 %s23, %s30
      %p32 = scmp.eq.s32.totalorder %s31, 0
      %s34 = sadd.s32 %s33, 1
      %s35 = scalar_select %p32, %s33, %s34
      %p38 = pneg %p32
      %p39 = scmp.eq.s32.totalorder %s23, 1
      %p40 = por %p38, %p39
      %p41 = scmp.ne.s32.totalorder %s33, %s36
      %p42 = scmp.eq.s32.totalorder %s23, 0
      %p43 = por %p41, %p42
      %p44 = scmp.ne.s32.totalorder %s33, %s36
      %p45 = scmp.eq.s32.totalorder %s28, 1
      %p46 = por %p44, %p45
      %p47 = scmp.ne.s32.totalorder %s36, %s37
      %p48 = scmp.eq.s32.totalorder %s28, 0
      %p49 = por %p47, %p48
      %p50 = scmp.ne.s32.totalorder %s36, %s37
      %p51 = scmp.eq.s32.totalorder %s29, 1
      %p52 = por %p50, %p51
      %p54 = scmp.ne.s32.totalorder %s37, %s53
      %p55 = scmp.eq.s32.totalorder %s29, 0
      %p56 = por %p54, %p55
      %s57 = ssub.s32 %s23, %s30
      %p58 = scmp.eq.s32.totalorder %s57, 0
      %s60 = sadd.s32 %s59, 1
      %s61 = scalar_select %p58, %s59, %s60
      %p64 = pneg %p58
      %p65 = scmp.eq.s32.totalorder %s23, 1
      %p66 = por %p64, %p65
      %p67 = scmp.ne.s32.totalorder %s59, %s62
      %p68 = scmp.eq.s32.totalorder %s23, 0
      %p69 = por %p67, %p68
      %p70 = scmp.ne.s32.totalorder %s59, %s62
      %p71 = scmp.eq.s32.totalorder %s28, 1
      %p72 = por %p70, %p71
      %p73 = scmp.ne.s32.totalorder %s62, %s63
      %p74 = scmp.eq.s32.totalorder %s28, 0
      %p75 = por %p73, %p74
      %p76 = scmp.ne.s32.totalorder %s62, %s63
      %p77 = scmp.eq.s32.totalorder %s29, 1
      %p78 = por %p76, %p77
      %p80 = scmp.ne.s32.totalorder %s63, %s79
      %p81 = scmp.eq.s32.totalorder %s29, 0
      %p82 = por %p80, %p81
      %s84 = sadd.s32 %s83, 1
      %p87 = scmp.eq.s32.totalorder %s23, 1
      %p88 = scmp.ne.s32.totalorder %s83, %s85
      %p89 = scmp.eq.s32.totalorder %s23, 0
      %p90 = por %p88, %p89
      %p91 = scmp.ne.s32.totalorder %s83, %s85
      %p92 = scmp.eq.s32.totalorder %s28, 1
      %p93 = por %p91, %p92
      %p94 = scmp.ne.s32.totalorder %s85, %s86
      %p95 = scmp.eq.s32.totalorder %s28, 0
      %p96 = por %p94, %p95
      %p97 = scmp.ne.s32.totalorder %s85, %s86
      %p98 = scmp.eq.s32.totalorder %s29, 1
      %p99 = por %p97, %p98
      %p101 = scmp.ne.s32.totalorder %s86, %s100
      %p102 = scmp.eq.s32.totalorder %s29, 0
      %p103 = por %p101, %p102
      %s105 = sadd.s32 %s104, 1
      %p108 = scmp.eq.s32.totalorder %s23, 1
      %p109 = scmp.ne.s32.totalorder %s104, %s106
      %p110 = scmp.eq.s32.totalorder %s23, 0
      %p111 = por %p109, %p110
      %p112 = scmp.ne.s32.totalorder %s104, %s106
      %p113 = scmp.eq.s32.totalorder %s28, 1
      %p114 = por %p112, %p113
      %p115 = scmp.ne.s32.totalorder %s106, %s107
      %p116 = scmp.eq.s32.totalorder %s28, 0
      %p117 = por %p115, %p116
      %p118 = scmp.ne.s32.totalorder %s106, %s107
      %p119 = scmp.eq.s32.totalorder %s29, 1
      %p120 = por %p118, %p119
      %p122 = scmp.ne.s32.totalorder %s107, %s121
      %p123 = scmp.eq.s32.totalorder %s29, 0
      %p124 = por %p122, %p123
      %s126 = sadd.s32 %s125, 1
      %p129 = scmp.eq.s32.totalorder %s23, 1
      %p130 = scmp.ne.s32.totalorder %s125, %s127
      %p131 = scmp.eq.s32.totalorder %s23, 0
      %p132 = por %p130, %p131
      %p133 = scmp.ne.s32.totalorder %s125, %s127
      %p134 = scmp.eq.s32.totalorder %s28, 1
      %p135 = por %p133, %p134
      %p136 = scmp.ne.s32.totalorder %s127, %s128
      %p137 = scmp.eq.s32.totalorder %s28, 0
      %p138 = por %p136, %p137
      %p139 = scmp.ne.s32.totalorder %s127, %s128
      %p140 = scmp.eq.s32.totalorder %s29, 1
      %p141 = por %p139, %p140
      %p143 = scmp.ne.s32.totalorder %s128, %s142
      %p144 = scmp.eq.s32.totalorder %s29, 0
      %p145 = por %p143, %p144
      %s147 = sadd.s32 %s146, 1
      %p150 = scmp.eq.s32.totalorder %s23, 1
      %p151 = scmp.ne.s32.totalorder %s146, %s148
      %p152 = scmp.eq.s32.totalorder %s23, 0
      %p153 = por %p151, %p152
      %p154 = scmp.ne.s32.totalorder %s146, %s148
      %p155 = scmp.eq.s32.totalorder %s28, 1
      %p156 = por %p154, %p155
      %p157 = scmp.ne.s32.totalorder %s148, %s149
      %p158 = scmp.eq.s32.totalorder %s28, 0
      %p159 = por %p157, %p158
      %p160 = scmp.ne.s32.totalorder %s148, %s149
      %p161 = scmp.eq.s32.totalorder %s29, 1
      %p162 = por %p160, %p161
      %p164 = scmp.ne.s32.totalorder %s149, %s163
      %p165 = scmp.eq.s32.totalorder %s29, 0
      %p166 = por %p164, %p165
      %s168 = sadd.s32 %s167, 1
      %p171 = scmp.eq.s32.totalorder %s23, 1
      %p172 = scmp.ne.s32.totalorder %s167, %s169
      %p173 = scmp.eq.s32.totalorder %s23, 0
      %p174 = por %p172, %p173
      %p175 = scmp.ne.s32.totalorder %s167, %s169
      %p176 = scmp.eq.s32.totalorder %s28, 1
      %p177 = por %p175, %p176
      %p178 = scmp.ne.s32.totalorder %s169, %s170
      %p179 = scmp.eq.s32.totalorder %s28, 0
      %p180 = por %p178, %p179
      %p181 = scmp.ne.s32.totalorder %s169, %s170
      %p182 = scmp.eq.s32.totalorder %s29, 1
      %p183 = por %p181, %p182
      %p185 = scmp.ne.s32.totalorder %s170, %s184
      %p186 = scmp.eq.s32.totalorder %s29, 0
      %p187 = por %p185, %p186
      %s189 = sadd.s32 %s188, 1
      %p192 = scmp.eq.s32.totalorder %s23, 1
      %p193 = scmp.ne.s32.totalorder %s188, %s190
      %p194 = scmp.eq.s32.totalorder %s23, 0
      %p195 = por %p193, %p194
      %p196 = scmp.ne.s32.totalorder %s188, %s190
      %p197 = scmp.eq.s32.totalorder %s28, 1
      %p198 = por %p196, %p197
      %p199 = scmp.ne.s32.totalorder %s190, %s191
      %p200 = scmp.eq.s32.totalorder %s28, 0
      %p201 = por %p199, %p200
      %p202 = scmp.ne.s32.totalorder %s190, %s191
      %p203 = scmp.eq.s32.totalorder %s29, 1
      %p204 = por %p202, %p203
      %p206 = scmp.ne.s32.totalorder %s191, %s205
      %p207 = scmp.eq.s32.totalorder %s29, 0
      %p208 = por %p206, %p207
      %s210 = sadd.s32 %s209, 1
      %p213 = scmp.eq.s32.totalorder %s23, 1
      %p214 = scmp.ne.s32.totalorder %s209, %s211
      %p215 = scmp.eq.s32.totalorder %s23, 0
      %p216 = por %p214, %p215
      %p217 = scmp.ne.s32.totalorder %s209, %s211
      %p218 = scmp.eq.s32.totalorder %s28, 1
      %p219 = por %p217, %p218
      %p220 = scmp.ne.s32.totalorder %s211, %s212
      %p221 = scmp.eq.s32.totalorder %s28, 0
      %p222 = por %p220, %p221
      %p223 = scmp.ne.s32.totalorder %s211, %s212
      %p224 = scmp.eq.s32.totalorder %s29, 1
      %p225 = por %p223, %p224
      %p227 = scmp.ne.s32.totalorder %s212, %s226
      %p228 = scmp.eq.s32.totalorder %s29, 0
      %p229 = por %p227, %p228
      %s230 = ssub.s32 %s23, %s30
      %p231 = scmp.eq.s32.totalorder %s230, 0
      %s233 = sadd.s32 %s232, 1
      %s234 = scalar_select %p231, %s232, %s233
      %p237 = pneg %p231
      %p238 = scmp.eq.s32.totalorder %s23, 1
      %p239 = por %p237, %p238
      %p240 = scmp.ne.s32.totalorder %s232, %s235
      %p241 = scmp.eq.s32.totalorder %s23, 0
      %p242 = por %p240, %p241
      %p243 = scmp.ne.s32.totalorder %s232, %s235
      %p244 = scmp.eq.s32.totalorder %s28, 1
      %p245 = por %p243, %p244
      %p246 = scmp.ne.s32.totalorder %s235, %s236
      %p247 = scmp.eq.s32.totalorder %s28, 0
      %p248 = por %p246, %p247
      %p249 = scmp.ne.s32.totalorder %s235, %s236
      %p250 = scmp.eq.s32.totalorder %s29, 1
      %p251 = por %p249, %p250
      %p253 = scmp.ne.s32.totalorder %s236, %s252
      %p254 = scmp.eq.s32.totalorder %s29, 0
      %p255 = por %p253, %p254
      %p256 = scmp.le.s32.totalorder 1, %s23
      %p257 = scmp.lt.s32.totalorder %s23, 3
      %p258 = pnand %p256, %p257
      %p259 = pneg %p258
      // Predicated region
      $region9: #{ircl_forward.1} parent=5 // pred_check
        _
      $region10: #{ircl_forward.1} parent=5 // pred_check_branch
        %261 = sbr.rel (%p258) target = $region12
      $region11: #{ircl_forward.1} parent=5 // pred_region
        %s262 = ssub.s32 %s23, 1
        // Predicated region
        $region13: #{ircl_forward.1} parent=11 // pred_check
          %p263 = pneg %p96
        $region14: #{ircl_forward.1} parent=11 // pred_check_branch
          %265 = sbr.rel (%p263) target = $region16
        $region15: #{ircl_forward.1} parent=11 // pred_region
          %267 = vsyncadd [#allocation5], 0
          %s268 = sshll.u32 %s2, 4
          %s269 = int_to_ptr.hbm [resolvable:$true] %s268
          %s270 = sshll.u32 [#allocation6], 4
          %s271 = int_to_ptr.vmem [resolvable:$true] %s270
          %276 = dma.hbm_to_vmem [thread:$0]  %s269, 4096, %s271, [#allocation5], 128, 128, 8
        $region16: #{ircl_forward.1} parent=11 // pred_fallthru
          _
        // Predicated region
        $region17: #{ircl_forward.1} parent=11 // pred_check
          %p277 = pneg %p117
        $region18: #{ircl_forward.1} parent=11 // pred_check_branch
          %279 = sbr.rel (%p277) target = $region20
        $region19: #{ircl_forward.1} parent=11 // pred_region
          _
        $region20: #{ircl_forward.1} parent=11 // pred_fallthru
          _
        // Predicated region
        $region21: #{ircl_forward.1} parent=11 // pred_check
          %p280 = pneg %p138
        $region22: #{ircl_forward.1} parent=11 // pred_check_branch
          %282 = sbr.rel (%p280) target = $region24
        $region23: #{ircl_forward.1} parent=11 // pred_region
          %284 = vsyncadd [#allocation8], 0
          %s285 = sshll.u32 %s4, 4
          %s286 = int_to_ptr.hbm [resolvable:$true] %s285
          %s287 = sshll.u32 [#allocation7], 4
          %s288 = int_to_ptr.vmem [resolvable:$true] %s287
          %293 = dma.hbm_to_vmem [thread:$0]  %s286, 2048, %s288, [#allocation8], 128, 128, 8
        $region24: #{ircl_forward.1} parent=11 // pred_fallthru
          _
        // Predicated region
        $region25: #{ircl_forward.1} parent=11 // pred_check
          %p294 = pneg %p159
        $region26: #{ircl_forward.1} parent=11 // pred_check_branch
          %296 = sbr.rel (%p294) target = $region28
        $region27: #{ircl_forward.1} parent=11 // pred_region
          %298 = vsyncadd [#allocation8], 0
          %s299 = sshll.u32 %s5, 4
          %s300 = int_to_ptr.hbm [resolvable:$true] %s299
          %s301 = sshll.u32 [#allocation9], 4
          %s302 = int_to_ptr.vmem [resolvable:$true] %s301
          %307 = dma.hbm_to_vmem [thread:$0]  %s300, 512, %s302, [#allocation8], 128, 128, 8
        $region28: #{ircl_forward.1} parent=11 // pred_fallthru
          _
        // Predicated region
        $region29: #{ircl_forward.1} parent=11 // pred_check
          %p308 = pneg %p180
        $region30: #{ircl_forward.1} parent=11 // pred_check_branch
          %310 = sbr.rel (%p308) target = $region32
        $region31: #{ircl_forward.1} parent=11 // pred_region
          _
        $region32: #{ircl_forward.1} parent=11 // pred_fallthru
          _
        // Predicated region
        $region33: #{ircl_forward.1} parent=11 // pred_check
          %p311 = pneg %p201
        $region34: #{ircl_forward.1} parent=11 // pred_check_branch
          %313 = sbr.rel (%p311) target = $region36
        $region35: #{ircl_forward.1} parent=11 // pred_region
          %315 = vsyncadd [#allocation11], 0
          %s316 = sshll.u32 %s7, 4
          %s317 = int_to_ptr.hbm [resolvable:$true] %s316
          %s318 = sshll.u32 [#allocation10], 4
          %s319 = int_to_ptr.vmem [resolvable:$true] %s318
          %324 = dma.hbm_to_vmem [thread:$0]  %s317, 2048, %s319, [#allocation11], 128, 128, 8
        $region36: #{ircl_forward.1} parent=11 // pred_fallthru
          _
        // Predicated region
        $region37: #{ircl_forward.1} parent=11 // pred_check
          %p325 = pneg %p222
        $region38: #{ircl_forward.1} parent=11 // pred_check_branch
          %327 = sbr.rel (%p325) target = $region40
        $region39: #{ircl_forward.1} parent=11 // pred_region
          _
        $region40: #{ircl_forward.1} parent=11 // pred_fallthru
          _
      $region12: #{ircl_forward.1} parent=5 // pred_fallthru
        _
      %p328 = scmp.lt.s32.totalorder %s23, 2
      // Predicated region
      $region41: #{ircl_forward.1} parent=5 // pred_check
        %p329 = pneg %p328
      $region42: #{ircl_forward.1} parent=5 // pred_check_branch
        %331 = sbr.rel (%p329) target = $region44
      $region43: #{ircl_forward.1} parent=5 // pred_region
        // Predicated region
        $region45: #{ircl_forward.1} parent=43 // pred_check
          %p332 = pneg %p43
        $region46: #{ircl_forward.1} parent=43 // pred_check_branch
          %334 = sbr.rel (%p332) target = $region48
        $region47: #{ircl_forward.1} parent=43 // pred_region
          %s335 = sand.u32 %s33, 1
          %s336 = scalar_lea.sflag [#allocation3], %s335
          %s337 = sand.u32 %s33, 1
          %s338 = smul.addr %s337, 32
          %s339 = scalar_lea.vmem [#allocation2], %s338
          %s340 = smul.u32 2, %s23
          %342 = vsyncadd %s336, 0
          %s343 = smul.addr %s340, 2
          %s344 = smul.addr %s343, 8
          %s345 = scalar_lea.hbm %s0, %s344
          %s346 = sshll.u32 %s345, 4
          %s347 = int_to_ptr.hbm [resolvable:$true] %s346
          %s348 = sshll.u32 %s339, 4
          %s349 = int_to_ptr.vmem [resolvable:$true] %s348
          %354 = dma.hbm_to_vmem [thread:$0]  %s347, 512, %s349, %s336, 256, 256, 16
        $region48: #{ircl_forward.1} parent=43 // pred_fallthru
          _
        // Predicated region
        $region49: #{ircl_forward.1} parent=43 // pred_check
          %p355 = pneg %p69
        $region50: #{ircl_forward.1} parent=43 // pred_check_branch
          %357 = sbr.rel (%p355) target = $region52
        $region51: #{ircl_forward.1} parent=43 // pred_region
          %s358 = sand.u32 %s23, 1
          %s359 = scalar_lea.sflag [#allocation5], %s358
          %s360 = sand.u32 %s59, 1
          %s361 = smul.addr %s360, 16
          %s362 = scalar_lea.vmem [#allocation4], %s361
          %s363 = smul.u32 2, %s23
          %365 = vsyncadd %s359, 0
          %s366 = smul.addr %s363, 8
          %s367 = scalar_lea.hbm %s1, %s366
          %s368 = sshll.u32 %s367, 4
          %s369 = int_to_ptr.hbm [resolvable:$true] %s368
          %s370 = sshll.u32 %s362, 4
          %s371 = int_to_ptr.vmem [resolvable:$true] %s370
          %376 = dma.hbm_to_vmem [thread:$0]  %s369, 256, %s371, %s359, 128, 128, 8
        $region52: #{ircl_forward.1} parent=43 // pred_fallthru
          _
      $region44: #{ircl_forward.1} parent=5 // pred_fallthru
        _
      %p377 = scmp.le.s32.totalorder 1, %s23
      %p378 = scmp.lt.s32.totalorder %s23, 3
      %p379 = pnand %p377, %p378
      %p380 = pneg %p379
      // Predicated region
      $region53: #{ircl_forward.1} parent=5 // pred_check
        _
      $region54: #{ircl_forward.1} parent=5 // pred_check_branch
        %382 = sbr.rel (%p379) target = $region56
      $region55: #{ircl_forward.1} parent=5 // pred_region
        %s383 = ssub.s32 %s23, 1
        %s384 = sand.u32 %s36, 1
        %s385 = scalar_lea.sflag [#allocation3], %s384
        %s386 = sand.u32 %s36, 1
        %s387 = smul.addr %s386, 32
        %s388 = scalar_lea.vmem [#allocation2], %s387
        // Predicated region
        $region57: #{ircl_forward.1} parent=55 // pred_check
          %p389 = pneg %p49
        $region58: #{ircl_forward.1} parent=55 // pred_check_branch
          %391 = sbr.rel (%p389) target = $region60
        $region59: #{ircl_forward.1} parent=55 // pred_region
          %393 = dma.done %s385, 512
        $region60: #{ircl_forward.1} parent=55 // pred_fallthru
          _
        %s394 = sand.u32 %s28, 1
        %s395 = scalar_lea.sflag [#allocation5], %s394
        %s396 = sand.u32 %s62, 1
        %s397 = smul.addr %s396, 16
        %s398 = scalar_lea.vmem [#allocation4], %s397
        // Predicated region
        $region61: #{ircl_forward.1} parent=55 // pred_check
          %p399 = pneg %p75
        $region62: #{ircl_forward.1} parent=55 // pred_check_branch
          %401 = sbr.rel (%p399) target = $region64
        $region63: #{ircl_forward.1} parent=55 // pred_region
          %403 = dma.done %s395, 256
        $region64: #{ircl_forward.1} parent=55 // pred_fallthru
          _
        // Predicated region
        $region65: #{ircl_forward.1} parent=55 // pred_check
          %p404 = pneg %p96
        $region66: #{ircl_forward.1} parent=55 // pred_check_branch
          %406 = sbr.rel (%p404) target = $region68
        $region67: #{ircl_forward.1} parent=55 // pred_region
          %408 = dma.done [#allocation5], 4096
        $region68: #{ircl_forward.1} parent=55 // pred_fallthru
          _
        // Predicated region
        $region69: #{ircl_forward.1} parent=55 // pred_check
          %p409 = pneg %p138
        $region70: #{ircl_forward.1} parent=55 // pred_check_branch
          %411 = sbr.rel (%p409) target = $region72
        $region71: #{ircl_forward.1} parent=55 // pred_region
          %413 = dma.done [#allocation8], 2048
        $region72: #{ircl_forward.1} parent=55 // pred_fallthru
          _
        // Predicated region
        $region73: #{ircl_forward.1} parent=55 // pred_check
          %p414 = pneg %p159
        $region74: #{ircl_forward.1} parent=55 // pred_check_branch
          %416 = sbr.rel (%p414) target = $region76
        $region75: #{ircl_forward.1} parent=55 // pred_region
          %418 = dma.done [#allocation8], 512
        $region76: #{ircl_forward.1} parent=55 // pred_fallthru
          _
        // Predicated region
        $region77: #{ircl_forward.1} parent=55 // pred_check
          %p419 = pneg %p201
        $region78: #{ircl_forward.1} parent=55 // pred_check_branch
          %421 = sbr.rel (%p419) target = $region80
        $region79: #{ircl_forward.1} parent=55 // pred_region
          %423 = dma.done [#allocation11], 2048
        $region80: #{ircl_forward.1} parent=55 // pred_fallthru
          _
        %s424 = sand.u32 %s36, 1
        %s425 = scalar_lea.sflag [#allocation3], %s424
        %s426 = sand.u32 %s36, 1
        %s427 = smul.addr %s426, 32
        %s428 = scalar_lea.vmem [#allocation2], %s427
        %p429 = pneg %p49
        %p430 = pneg %p46
        %s431 = sand.u32 %s28, 1
        %s432 = scalar_lea.sflag [#allocation5], %s431
        %s433 = sand.u32 %s62, 1
        %s434 = smul.addr %s433, 16
        %s435 = scalar_lea.vmem [#allocation4], %s434
        %p436 = pneg %p75
        %p437 = pneg %p72
        %p438 = pneg %p96
        %p439 = pneg %p93
        %p440 = pneg %p117
        %p441 = pneg %p114
        %p442 = pneg %p138
        %p443 = pneg %p135
        %p444 = pneg %p159
        %p445 = pneg %p156
        %p446 = pneg %p180
        %p447 = pneg %p177
        %p448 = pneg %p201
        %p449 = pneg %p198
        %p450 = pneg %p222
        %p451 = pneg %p219
        %p452 = pneg %p248
        %p453 = pneg %p245
        %s454 = smul.u32 2, %s28
        %p455 = scmp.lt.s32.totalorder %s454, 3
        %s456 = scalar_select %p455, %s454, 3
        %s457 = smul.addr %s456, 8
        %s458 = scalar_lea.vmem %s9, %s457
        %s459 = smul.u32 2, %s28
        %s460 = smul.u32 2, %s28
        %s461 = smul.u32 2, %s28
        %p462 = scmp.lt.s32.totalorder %s461, 3
        %s463 = scalar_select %p462, %s461, 3
        %s464 = smul.addr %s463, 8
        %s465 = scalar_lea.vmem %s9, %s464
        %s466 = smul.u32 2, %s28
        %v467 = vld [vmem:[%s388] sm:$0xff]
        %v468 = vld [vmem:[%s388 + $0x8] sm:$0xff]
        %v469 = vld [vmem:[%s388 + $0x10] sm:$0xff]
        %v470 = vld [vmem:[%s388 + $0x18] sm:$0xff]
        %v471 = vld [vmem:[#allocation6] sm:$0xff]
        %v472 = vld [vmem:[#allocation6 + $0x8] sm:$0xff]
        %v473 = vld [vmem:[#allocation6 + $0x10] sm:$0xff]
        %v474 = vld [vmem:[#allocation6 + $0x18] sm:$0xff]
        %v475 = vld [vmem:[#allocation6 + $0x20] sm:$0xff]
        %v476 = vld [vmem:[#allocation6 + $0x28] sm:$0xff]
        %v477 = vld [vmem:[#allocation6 + $0x30] sm:$0xff]
        %v478 = vld [vmem:[#allocation6 + $0x38] sm:$0xff]
        %v479 = vld [vmem:[#allocation6 + $0x40] sm:$0xff]
        %v480 = vld [vmem:[#allocation6 + $0x48] sm:$0xff]
        %v481 = vld [vmem:[#allocation6 + $0x50] sm:$0xff]
        %v482 = vld [vmem:[#allocation6 + $0x58] sm:$0xff]
        %v483 = vld [vmem:[#allocation6 + $0x60] sm:$0xff]
        %v484 = vld [vmem:[#allocation6 + $0x68] sm:$0xff]
        %v485 = vld [vmem:[#allocation6 + $0x70] sm:$0xff]
        %v486 = vld [vmem:[#allocation6 + $0x78] sm:$0xff]
        %v487 = vld [vmem:[#allocation6 + $0x80] sm:$0xff]
        %v488 = vld [vmem:[#allocation6 + $0x88] sm:$0xff]
        %v489 = vld [vmem:[#allocation6 + $0x90] sm:$0xff]
        %v490 = vld [vmem:[#allocation6 + $0x98] sm:$0xff]
        %v491 = vld [vmem:[#allocation6 + $0xa0] sm:$0xff]
        %v492 = vld [vmem:[#allocation6 + $0xa8] sm:$0xff]
        %v493 = vld [vmem:[#allocation6 + $0xb0] sm:$0xff]
        %v494 = vld [vmem:[#allocation6 + $0xb8] sm:$0xff]
        %v495 = vld [vmem:[#allocation6 + $0xc0] sm:$0xff]
        %v496 = vld [vmem:[#allocation6 + $0xc8] sm:$0xff]
        %v497 = vld [vmem:[#allocation6 + $0xd0] sm:$0xff]
        %v498 = vld [vmem:[#allocation6 + $0xd8] sm:$0xff]
        %v499 = vld [vmem:[#allocation6 + $0xe0] sm:$0xff]
        %v500 = vld [vmem:[#allocation6 + $0xe8] sm:$0xff]
        %v501 = vld [vmem:[#allocation6 + $0xf0] sm:$0xff]
        %v502 = vld [vmem:[#allocation6 + $0xf8] sm:$0xff]
        %v503 = vld [vmem:[%s3] sm:$0x1]
        %v505 = vperm.slane %v503, 0
        %507 = vmatpush.msra.mxu0 %v486
        %508 = vmatpush.msra.mxu0 %v485
        %509 = vmatpush.msra.mxu0 %v484
        %510 = vmatpush.msra.mxu0 %v483
        %511 = vmatpush.msra.mxu0 %v482
        %512 = vmatpush.msra.mxu0 %v481
        %513 = vmatpush.msra.mxu0 %v480
        %514 = vmatpush.msra.mxu0 %v479
        %515 = vmatpush.msra.mxu0 %v478
        %516 = vmatpush.msra.mxu0 %v477
        %517 = vmatpush.msra.mxu0 %v476
        %518 = vmatpush.msra.mxu0 %v475
        %519 = vmatpush.msra.mxu0 %v474
        %520 = vmatpush.msra.mxu0 %v473
        %521 = vmatpush.msra.mxu0 %v472
        %522 = vmatpush.msra.mxu0 %v471
        %523 = vmatmul.f32.gmra.mxu0 %v467
        %v524 = vpop.f32.mrf.mxu0
        %v525 = vadd.f32 %v505, %v524
        %526 = vmatmul.f32.gmra.mxu0 %v469
        %v527 = vpop.f32.mrf.mxu0
        %v528 = vadd.f32 %v505, %v527
        %529 = vdwg.mxu0
        %530 = vmatpush.msra.mxu0 %v502
        %531 = vmatpush.msra.mxu0 %v501
        %532 = vmatpush.msra.mxu0 %v500
        %533 = vmatpush.msra.mxu0 %v499
        %534 = vmatpush.msra.mxu0 %v498
        %535 = vmatpush.msra.mxu0 %v497
        %536 = vmatpush.msra.mxu0 %v496
        %537 = vmatpush.msra.mxu0 %v495
        %538 = vmatpush.msra.mxu0 %v494
        %539 = vmatpush.msra.mxu0 %v493
        %540 = vmatpush.msra.mxu0 %v492
        %541 = vmatpush.msra.mxu0 %v491
        %542 = vmatpush.msra.mxu0 %v490
        %543 = vmatpush.msra.mxu0 %v489
        %544 = vmatpush.msra.mxu0 %v488
        %545 = vmatpush.msra.mxu0 %v487
        %546 = vmatmul.f32.gmra.mxu0 %v468
        %v547 = vpop.f32.mrf.mxu0
        %v548 = vadd.f32 %v525, %v547
        %549 = vmatmul.f32.gmra.mxu0 %v470
        %v550 = vpop.f32.mrf.mxu0
        %v551 = vadd.f32 %v528, %v550
        %552 = vdwg.mxu0
        %v553 = vmax.f32 %v548, 0.0
        %v554 = vmax.f32 %v551, 0.0
        %v555 = vld [vmem:[#allocation7] sm:$0xff]
        %v556 = vld [vmem:[#allocation7 + $0x8] sm:$0xff]
        %v557 = vld [vmem:[#allocation7 + $0x10] sm:$0xff]
        %v558 = vld [vmem:[#allocation7 + $0x18] sm:$0xff]
        %v559 = vld [vmem:[#allocation7 + $0x20] sm:$0xff]
        %v560 = vld [vmem:[#allocation7 + $0x28] sm:$0xff]
        %v561 = vld [vmem:[#allocation7 + $0x30] sm:$0xff]
        %v562 = vld [vmem:[#allocation7 + $0x38] sm:$0xff]
        %v563 = vld [vmem:[#allocation7 + $0x40] sm:$0xff]
        %v564 = vld [vmem:[#allocation7 + $0x48] sm:$0xff]
        %v565 = vld [vmem:[#allocation7 + $0x50] sm:$0xff]
        %v566 = vld [vmem:[#allocation7 + $0x58] sm:$0xff]
        %v567 = vld [vmem:[#allocation7 + $0x60] sm:$0xff]
        %v568 = vld [vmem:[#allocation7 + $0x68] sm:$0xff]
        %v569 = vld [vmem:[#allocation7 + $0x70] sm:$0xff]
        %v570 = vld [vmem:[#allocation7 + $0x78] sm:$0xff]
        %v571 = vld [vmem:[%s398] sm:$0xff]
        %v572 = vld [vmem:[%s398 + $0x8] sm:$0xff]
        %v573 = vld [vmem:[#allocation9] sm:$0xff]
        %v574 = vld [vmem:[#allocation9 + $0x8] sm:$0xff]
        %v575 = vld [vmem:[#allocation9 + $0x10] sm:$0xff]
        %v576 = vld [vmem:[#allocation9 + $0x18] sm:$0xff]
        %vm577 = vcmask 261120
        %v579 = vsel %vm577, %v571, 0
        %v582 = vsel %vm577, %v572, 0
        %584 = vmatpush.msra.mxu0 0.0
        %585 = vmatpush.msra.mxu0 0.0
        %586 = vmatpush.msra.mxu0 0.0
        %587 = vmatpush.msra.mxu0 0.0
        %588 = vmatpush.msra.mxu0 0.0
        %589 = vmatpush.msra.mxu0 0.0
        %590 = vmatpush.msra.mxu0 0.0
        %591 = vmatpush.msra.mxu0 0.0
        %592 = vmatpush.msra.mxu0 0.0
        %593 = vmatpush.msra.mxu0 0.0
        %594 = vmatpush.msra.mxu0 0.0
        %595 = vmatpush.msra.mxu0 0.0
        %596 = vmatpush.msra.mxu0 %v576
        %597 = vmatpush.msra.mxu0 %v575
        %598 = vmatpush.msra.mxu0 %v574
        %599 = vmatpush.msra.mxu0 %v573
        %600 = vmatmul.f32.gmra.mxu0 %v579
        %v601 = vpop.f32.mrf.mxu0
        %v602 = vadd.f32 0.0, %v601
        %603 = vmatmul.f32.gmra.mxu0 %v582
        %v604 = vpop.f32.mrf.mxu0
        %v605 = vadd.f32 0.0, %v604
        %606 = vdwg.mxu0
        %607 = vmatpush.msra.mxu0 %v570
        %608 = vmatpush.msra.mxu0 %v569
        %609 = vmatpush.msra.mxu0 %v568
        %610 = vmatpush.msra.mxu0 %v567
        %611 = vmatpush.msra.mxu0 %v566
        %612 = vmatpush.msra.mxu0 %v565
        %613 = vmatpush.msra.mxu0 %v564
        %614 = vmatpush.msra.mxu0 %v563
        %615 = vmatpush.msra.mxu0 %v562
        %616 = vmatpush.msra.mxu0 %v561
        %617 = vmatpush.msra.mxu0 %v560
        %618 = vmatpush.msra.mxu0 %v559
        %619 = vmatpush.msra.mxu0 %v558
        %620 = vmatpush.msra.mxu0 %v557
        %621 = vmatpush.msra.mxu0 %v556
        %622 = vmatpush.msra.mxu0 %v555
        %623 = vmatmul.f32.gmra.mxu0 %v553
        %v624 = vpop.f32.mrf.mxu0
        %v625 = vadd.f32 %v602, %v624
        %626 = vmatmul.f32.gmra.mxu0 %v554
        %v627 = vpop.f32.mrf.mxu0
        %v628 = vadd.f32 %v605, %v627
        %629 = vdwg.mxu0
        %v630 = vld [vmem:[%s6] sm:$0x1]
        %v632 = vperm.slane %v630, 0
        %v634 = vadd.f32 %v625, %v632
        %v635 = vadd.f32 %v628, %v632
        %v636 = vmax.f32 %v634, 0.0
        %v637 = vmax.f32 %v635, 0.0
        %v638 = vld [vmem:[#allocation10] sm:$0xff]
        %v639 = vld [vmem:[#allocation10 + $0x8] sm:$0xff]
        %v640 = vld [vmem:[#allocation10 + $0x10] sm:$0xff]
        %v641 = vld [vmem:[#allocation10 + $0x18] sm:$0xff]
        %v642 = vld [vmem:[#allocation10 + $0x20] sm:$0xff]
        %v643 = vld [vmem:[#allocation10 + $0x28] sm:$0xff]
        %v644 = vld [vmem:[#allocation10 + $0x30] sm:$0xff]
        %v645 = vld [vmem:[#allocation10 + $0x38] sm:$0xff]
        %v646 = vld [vmem:[#allocation10 + $0x40] sm:$0xff]
        %v647 = vld [vmem:[#allocation10 + $0x48] sm:$0xff]
        %v648 = vld [vmem:[#allocation10 + $0x50] sm:$0xff]
        %v649 = vld [vmem:[#allocation10 + $0x58] sm:$0xff]
        %v650 = vld [vmem:[#allocation10 + $0x60] sm:$0xff]
        %v651 = vld [vmem:[#allocation10 + $0x68] sm:$0xff]
        %v652 = vld [vmem:[#allocation10 + $0x70] sm:$0xff]
        %v653 = vld [vmem:[#allocation10 + $0x78] sm:$0xff]
        %v654 = vld [vmem:[%s8] sm:$0x1]
        %v656 = vperm.slane %v654, 0
        %658 = vmatpush.msra.mxu0 %v653
        %659 = vmatpush.msra.mxu0 %v652
        %660 = vmatpush.msra.mxu0 %v651
        %661 = vmatpush.msra.mxu0 %v650
        %662 = vmatpush.msra.mxu0 %v649
        %663 = vmatpush.msra.mxu0 %v648
        %664 = vmatpush.msra.mxu0 %v647
        %665 = vmatpush.msra.mxu0 %v646
        %666 = vmatpush.msra.mxu0 %v645
        %667 = vmatpush.msra.mxu0 %v644
        %668 = vmatpush.msra.mxu0 %v643
        %669 = vmatpush.msra.mxu0 %v642
        %670 = vmatpush.msra.mxu0 %v641
        %671 = vmatpush.msra.mxu0 %v640
        %672 = vmatpush.msra.mxu0 %v639
        %673 = vmatpush.msra.mxu0 %v638
        %674 = vmatmul.f32.gmra.mxu0 %v636
        %v675 = vpop.f32.mrf.mxu0
        %v676 = vadd.f32 %v656, %v675
        %677 = vmatmul.f32.gmra.mxu0 %v637
        %v678 = vpop.f32.mrf.mxu0
        %v679 = vadd.f32 %v656, %v678
        %680 = vdwg.mxu0
        %681 = vst [vmem:[%s465] sm:$0xff] %v676
        %682 = vst [vmem:[%s465 + $0x8] sm:$0xff] %v679
        %s683 = smul.u32 2, %s28
        %p684 = scmp.lt.s32.totalorder %s683, 3
        %s685 = scalar_select %p684, %s683, 3
        %s686 = smul.addr %s685, 8
        %s687 = scalar_lea.vmem %s9, %s686
        // Predicated region
        $region81: #{ircl_forward.1} parent=55 // pred_check
          %p688 = pneg %p245
        $region82: #{ircl_forward.1} parent=55 // pred_check_branch
          %690 = sbr.rel (%p688) target = $region84
        $region83: #{ircl_forward.1} parent=55 // pred_region
          %s691 = smul.u32 2, %s28
        $region84: #{ircl_forward.1} parent=55 // pred_fallthru
          _
      $region56: #{ircl_forward.1} parent=5 // pred_fallthru
        _
      %p692 = scmp.le.s32.totalorder 2, %s23
      // Predicated region
      $region85: #{ircl_forward.1} parent=5 // pred_check
        %p693 = pneg %p692
      $region86: #{ircl_forward.1} parent=5 // pred_check_branch
        %695 = sbr.rel (%p693) target = $region88
      $region87: #{ircl_forward.1} parent=5 // pred_region
        %s696 = ssub.s32 %s23, 2
        // Predicated region
        $region89: #{ircl_forward.1} parent=87 // pred_check
          %p697 = pneg %p251
        $region90: #{ircl_forward.1} parent=87 // pred_check_branch
          %699 = sbr.rel (%p697) target = $region92
        $region91: #{ircl_forward.1} parent=87 // pred_region
          %s700 = smul.u32 2, %s29
          %p701 = scmp.lt.s32.totalorder %s700, 3
          %s702 = scalar_select %p701, %s700, 3
          %s703 = smul.addr %s702, 8
          %s704 = scalar_lea.vmem %s9, %s703
        $region92: #{ircl_forward.1} parent=87 // pred_fallthru
          _
      $region88: #{ircl_forward.1} parent=5 // pred_fallthru
        _
    $region6: #{ircl_forward.1} parent=1 // loop_footer
      %s27 = sadd.s32 1, %s23
    $region7: #{ircl_forward.1} parent=1 // loop_footer_branch
      %22 = sbr.rel target = $region3
    $region8: #{ircl_forward.1} parent=1 // loop_exit
      _
    %705 = vsyncpa [#allocation3], 1
    %s706 = scalar_lea.sflag [#allocation3], 1
    %707 = vsyncpa %s706, 1
    %708 = vsyncpa [#allocation5], 1
    %s709 = scalar_lea.sflag [#allocation5], 1
    %710 = vsyncpa %s709, 1
    %711 = vsyncpa [#allocation8], 1
    %712 = vsyncpa [#allocation11], 1

</llo_original>
